<compile_context>
chip_gen: v6e
topology: v6e:2x2x1
jax: 0.10.0
libtpu: 0.0.40
codegen_flags: <defaults>
</compile_context>

<pallas_src>
import jax
import jax.numpy as jnp
from jax.experimental import pallas as pl
from jax.experimental.pallas import tpu as pltpu


def _mlp_h1_kernel(x_ref, w1t_ref, b1_ref, w2_ref, b2_ref, o_ref):
    # x_ref:   (TB, D)  VMEM
    # w1t_ref: (D, H)   VMEM (resident across the batch grid)
    # b1_ref:  (1, H)   VMEM (resident)
    # w2_ref:  (1, H)   VMEM (resident)
    # b2_ref:  (1, 1)   SMEM scalar
    # o_ref:   (TB, 1)  VMEM
    x = x_ref[...]                                            # f32 (TB, D)

    # Hidden layer on the MXU, f32 accumulate.
    h = jnp.dot(x, w1t_ref[...], preferred_element_type=jnp.float32)
    h = h + b1_ref[...]                                       # (TB, H)
    h = jnp.maximum(h, 0.0)                                   # ReLU

    # TODO(synk): nn.Dropout is implemented as eval-mode identity; training-mode
    # stochastic masking would need pltpu.prng_seed/prng_random_bits.

    # Output layer has a single unit -> VPU multiply + lane reduction
    # (avoids a 1/128-utilized MXU matvec and the (1,H)->(H,1) relayout).
    y = jnp.sum(h * w2_ref[...], axis=-1, keepdims=True)      # (TB, 1)
    y = y + b2_ref[0, 0]
    o_ref[...] = y.astype(o_ref.dtype)


def _pick_tb(batch):
    # Largest batch tile (multiple of 8) that evenly divides the batch;
    # kept modest so per-tile VMEM stays tiny on every TPU generation.
    for tb in (512, 256, 128, 64, 32, 16, 8):
        if batch % tb == 0:
            return tb
    return batch  # ragged small batch: single full-extent block


def mlp_h1_forward(x, w1, b1, w2, b2):
    """MLP_H1 forward (eval mode).

    x:  (B, D)  float32
    w1: (H, D)  float32   (PyTorch nn.Linear weight layout)
    b1: (H,)    float32
    w2: (1, H)  float32
    b2: (1,)    float32
    returns (B, 1) float32
    """
    B, D = x.shape
    H = w1.shape[0]

    w1t = w1.T                      # (D, H): transpose once outside the kernel
    b1_2d = b1.reshape(1, H)
    b2_2d = b2.reshape(1, 1)

    tb = _pick_tb(B)
    grid = (B // tb,)

    cost = pl.CostEstimate(
        flops=2 * B * D * H + 2 * B * H,
        transcendentals=0,
        bytes_accessed=4 * (B * D + D * H + 2 * H + 1 + B),
    )

    return pl.pallas_call(
        _mlp_h1_kernel,
        out_shape=jax.ShapeDtypeStruct((B, 1), x.dtype),
        grid_spec=pltpu.PrefetchScalarGridSpec(
            num_scalar_prefetch=0,
            grid=grid,
            in_specs=[
                pl.BlockSpec((tb, D), lambda i: (i, 0)),      # x: batch-tiled
                pl.BlockSpec((D, H), lambda i: (0, 0)),       # W1.T: resident
                pl.BlockSpec((1, H), lambda i: (0, 0)),       # b1:  resident
                pl.BlockSpec((1, H), lambda i: (0, 0)),       # W2:  resident
                pl.BlockSpec(memory_space=pltpu.MemorySpace.SMEM),  # b2 scalar
            ],
            out_specs=pl.BlockSpec((tb, 1), lambda i: (i, 0)),
        ),
        compiler_params=pltpu.CompilerParams(
            # Batch tiles are independent -> let v7x shard them across its
            # two TensorCores (no effect on single-TC v5e/v6e).
            dimension_semantics=("parallel",),
        ),
        cost_estimate=cost,
    )(x, w1t, b1_2d, w2, b2_2d)


if __name__ == "__main__":
    key = jax.random.PRNGKey(0)
    k_x, k_w1, k_b1, k_w2, k_b2 = jax.random.split(key, 5)

    batch = 64
    input_size = 32
    hidden = 256

    x = jax.random.normal(k_x, (batch, input_size), dtype=jnp.float32)

    # Deterministic init mimicking nn.Linear's uniform(-1/sqrt(fan_in), ...)
    bound1 = 1.0 / (input_size ** 0.5)
    w1 = jax.random.uniform(k_w1, (hidden, input_size),
                            minval=-bound1, maxval=bound1, dtype=jnp.float32)
    b1 = jax.random.uniform(k_b1, (hidden,),
                            minval=-bound1, maxval=bound1, dtype=jnp.float32)

    bound2 = 1.0 / (hidden ** 0.5)
    w2 = jax.random.uniform(k_w2, (1, hidden),
                            minval=-bound2, maxval=bound2, dtype=jnp.float32)
    b2 = jax.random.uniform(k_b2, (1,),
                            minval=-bound2, maxval=bound2, dtype=jnp.float32)

    y = mlp_h1_forward(x, w1, b1, w2, b2)
    jax.block_until_ready(y)

    # Pure-JAX reference (eval-mode dropout == identity).
    h_ref = jnp.maximum(x @ w1.T + b1, 0.0)
    y_ref = h_ref @ w2.T + b2

    assert y.shape == (batch, 1)
    assert jnp.allclose(y, y_ref, atol=1e-4, rtol=1e-4)

    print("KERNEL_OK")
</pallas_src>

<mosaic_0001>
module attributes {stable_mosaic.version = 11 : i64} {
  func.func @_mlp_h1_kernel(%arg0: i32, %arg1: memref<64x32xf32, #tpu.memory_space<vmem>>, %arg2: memref<32x256xf32, #tpu.memory_space<vmem>>, %arg3: memref<1x256xf32, #tpu.memory_space<vmem>>, %arg4: memref<1x256xf32, #tpu.memory_space<vmem>>, %arg5: memref<1x1xf32, #tpu.memory_space<smem>>, %arg6: memref<64x1xf32, #tpu.memory_space<vmem>>) attributes {dimension_semantics = [#tpu.dimension_semantics<parallel>], iteration_bounds = array<i64: 1>, scalar_prefetch = 0 : i64, scratch_operands = 0 : i64, tpu.core_type = #tpu.core_type<tc>, window_params = [{transform_indices = @transform_0, window_bounds = array<i64: 64, 32>}, {pipeline_mode = #tpu.pipeline_mode<synchronous>, transform_indices = @transform_1, window_bounds = array<i64: 32, 256>}, {pipeline_mode = #tpu.pipeline_mode<synchronous>, transform_indices = @transform_2, window_bounds = array<i64: 1, 256>}, {pipeline_mode = #tpu.pipeline_mode<synchronous>, transform_indices = @transform_3, window_bounds = array<i64: 1, 256>}, {transform_indices = @transform_4, window_bounds = array<i64: 1, 1>}, {transform_indices = @transform_5, window_bounds = array<i64: 64, 1>}]} {
    %c0 = arith.constant 0 : index
    %c0_0 = arith.constant 0 : index
    %0 = vector.load %arg1[%c0, %c0_0] : memref<64x32xf32, #tpu.memory_space<vmem>>, vector<64x32xf32>
    %c0_1 = arith.constant 0 : index
    %c0_2 = arith.constant 0 : index
    %1 = vector.load %arg2[%c0_1, %c0_2] : memref<32x256xf32, #tpu.memory_space<vmem>>, vector<32x256xf32>
    %cst = arith.constant dense<0.000000e+00> : vector<64x256xf32>
    %2 = tpu.matmul %0, %1, %cst {dimension_numbers = #tpu.dot_dimension_numbers<[1], [0], [0], [1], [0, 0, 1, 1], [], []>} : vector<64x32xf32>, vector<32x256xf32>, vector<64x256xf32> -> vector<64x256xf32>
    %c0_3 = arith.constant 0 : index
    %c0_4 = arith.constant 0 : index
    %3 = vector.load %arg3[%c0_3, %c0_4] : memref<1x256xf32, #tpu.memory_space<vmem>>, vector<1x256xf32>
    %4 = vector.broadcast %3 : vector<1x256xf32> to vector<64x256xf32>
    %5 = arith.addf %2, %4 : vector<64x256xf32>
    %cst_5 = arith.constant 0.000000e+00 : f32
    %6 = vector.broadcast %cst_5 : f32 to vector<64x256xf32>
    %7 = arith.maximumf %5, %6 : vector<64x256xf32>
    %c0_6 = arith.constant 0 : index
    %c0_7 = arith.constant 0 : index
    %8 = vector.load %arg4[%c0_6, %c0_7] : memref<1x256xf32, #tpu.memory_space<vmem>>, vector<1x256xf32>
    %9 = vector.broadcast %8 : vector<1x256xf32> to vector<64x256xf32>
    %10 = arith.mulf %7, %9 : vector<64x256xf32>
    %cst_8 = arith.constant dense<0.000000e+00> : vector<64xf32>
    %11 = vector.multi_reduction <add>, %10, %cst_8 [1] : vector<64x256xf32> to vector<64xf32>
    %12 = vector.shape_cast %11 : vector<64xf32> to vector<64x1xf32>
    %c0_9 = arith.constant 0 : index
    %c0_10 = arith.constant 0 : index
    %13 = memref.load %arg5[%c0_9, %c0_10] : memref<1x1xf32, #tpu.memory_space<smem>>
    %14 = vector.broadcast %13 : f32 to vector<64x1xf32>
    %15 = arith.addf %12, %14 : vector<64x1xf32>
    %c0_11 = arith.constant 0 : index
    %c0_12 = arith.constant 0 : index
    %16 = vector.load %arg6[%c0_11, %c0_12] : memref<64x1xf32, #tpu.memory_space<vmem>>, vector<64x1xf32>
    tpu.vector_store %arg6[%c0_11, %c0_12], %15 {strides = array<i32>} : memref<64x1xf32, #tpu.memory_space<vmem>>, vector<64x1xf32>,
    return
  }
  func.func @transform_0(%arg0: i32) -> (i32, i32) {
    %c0_i32 = arith.constant 0 : i32
    %c0_i32_0 = arith.constant 0 : i32
    return %arg0, %c0_i32 : i32, i32
  }
  func.func @transform_1(%arg0: i32) -> (i32, i32) {
    %c0_i32 = arith.constant 0 : i32
    %c0_i32_0 = arith.constant 0 : i32
    %c0_i32_1 = arith.constant 0 : i32
    return %c0_i32, %c0_i32_0 : i32, i32
  }
  func.func @transform_2(%arg0: i32) -> (i32, i32) {
    %c0_i32 = arith.constant 0 : i32
    %c0_i32_0 = arith.constant 0 : i32
    %c0_i32_1 = arith.constant 0 : i32
    return %c0_i32, %c0_i32_0 : i32, i32
  }
  func.func @transform_3(%arg0: i32) -> (i32, i32) {
    %c0_i32 = arith.constant 0 : i32
    %c0_i32_0 = arith.constant 0 : i32
    %c0_i32_1 = arith.constant 0 : i32
    return %c0_i32, %c0_i32_0 : i32, i32
  }
  func.func @transform_4(%arg0: i32) -> (i32, i32) {
    %c0_i32 = arith.constant 0 : i32
    %c0_i32_0 = arith.constant 0 : i32
    %c0_i32_1 = arith.constant 0 : i32
    return %c0_i32, %c0_i32_0 : i32, i32
  }
  func.func @transform_5(%arg0: i32) -> (i32, i32) {
    %c0_i32 = arith.constant 0 : i32
    %c0_i32_0 = arith.constant 0 : i32
    return %arg0, %c0_i32 : i32, i32
  }
}

</mosaic_0001>

<llo_original>
// kernel: tpu_custom_call.1
$region0: #{tpu_custom_call.1}
  #allocation0 [shape = 'u32[]', space=smem, size = 0x4, offset = 0x4, fixed_abs, tag = 'smem constant byte address 0x4 - core index']
  #allocation1 [shape = 'u32[144,128]{1,0:T(1,128)}', space=vmem, size = 0x12000, scoped, tag = 'internal scratch']
  #allocation2 [shape = 'f32[1,1]{1,0:T(1,128)S(6)}', space=smem, size = 0x200, scoped, tag = 'scoped memory for tpu_custom_call.1']
  %s0 = inlined_call_operand.vmem [shape: f32[64,32], index: 0, kind: input, shape index: {}]
  %s1 = inlined_call_operand.vmem [shape: f32[32,256], index: 1, kind: input, shape index: {}]
  %s2 = inlined_call_operand.vmem [shape: f32[1,256], index: 2, kind: input, shape index: {}]
  %s3 = inlined_call_operand.vmem [shape: f32[1,256], index: 3, kind: input, shape index: {}]
  %s4 = inlined_call_operand.<no memory space> [shape: f32[1,1], index: 4, kind: input, shape index: {}]
  %s5 = inlined_call_operand.vmem [shape: f32[64,1], index: 5, kind: output, shape index: {}]
  %s6 = sld [smem:[#allocation0]]
  $region30: #{tpu_custom_call.1} parent=0
    _
  %s8 = ssub.s32 1, %s6
  %s9 = scalar_select 0, %s8, %s6
  %10 = sst [smem:[#allocation2]] %s4
  // Predicated region
  $region2: #{tpu_custom_call.1} parent=0 // pred_check
    _
  $region3: #{tpu_custom_call.1} parent=0 // pred_check_branch
    %12 = sbr.rel (0) target = $region5
  $region4: #{tpu_custom_call.1} parent=0 // pred_region
    _
  $region5: #{tpu_custom_call.1} parent=0 // pred_fallthru
    _
  // Predicated region
  $region6: #{tpu_custom_call.1} parent=0 // pred_check
    _
  $region7: #{tpu_custom_call.1} parent=0 // pred_check_branch
    %14 = sbr.rel (0) target = $region9
  $region8: #{tpu_custom_call.1} parent=0 // pred_region
    _
  $region9: #{tpu_custom_call.1} parent=0 // pred_fallthru
    _
  // Predicated region
  $region10: #{tpu_custom_call.1} parent=0 // pred_check
    _
  $region11: #{tpu_custom_call.1} parent=0 // pred_check_branch
    %16 = sbr.rel (0) target = $region13
  $region12: #{tpu_custom_call.1} parent=0 // pred_region
    _
  $region13: #{tpu_custom_call.1} parent=0 // pred_fallthru
    _
  // Predicated region
  $region14: #{tpu_custom_call.1} parent=0 // pred_check
    _
  $region15: #{tpu_custom_call.1} parent=0 // pred_check_branch
    %18 = sbr.rel (0) target = $region17
  $region16: #{tpu_custom_call.1} parent=0 // pred_region
    _
  $region17: #{tpu_custom_call.1} parent=0 // pred_fallthru
    _
  // Predicated region
  $region18: #{tpu_custom_call.1} parent=0 // pred_check
    _
  $region19: #{tpu_custom_call.1} parent=0 // pred_check_branch
    %20 = sbr.rel (0) target = $region21
  $region20: #{tpu_custom_call.1} parent=0 // pred_region
    _
  $region21: #{tpu_custom_call.1} parent=0 // pred_fallthru
    _
  %v21 = vld [vmem:[%s0] sm:$0xff]
  %v22 = vld [vmem:[%s0 + $0x8] sm:$0xff]
  %v23 = vld [vmem:[%s0 + $0x10] sm:$0xff]
  %v24 = vld [vmem:[%s0 + $0x18] sm:$0xff]
  %v25 = vld [vmem:[%s0 + $0x20] sm:$0xff]
  %v26 = vld [vmem:[%s0 + $0x28] sm:$0xff]
  %v27 = vld [vmem:[%s0 + $0x30] sm:$0xff]
  %v28 = vld [vmem:[%s0 + $0x38] sm:$0xff]
  %v29 = vld [vmem:[%s1] sm:$0xff]
  %v30 = vld [vmem:[%s1 + $0x8] sm:$0xff]
  %v31 = vld [vmem:[%s1 + $0x10] sm:$0xff]
  %v32 = vld [vmem:[%s1 + $0x18] sm:$0xff]
  %v33 = vld [vmem:[%s1 + $0x20] sm:$0xff]
  %v34 = vld [vmem:[%s1 + $0x28] sm:$0xff]
  %v35 = vld [vmem:[%s1 + $0x30] sm:$0xff]
  %v36 = vld [vmem:[%s1 + $0x38] sm:$0xff]
  %v37 = vld [vmem:[%s2] sm:$0x3]
  %v39 = vlaneseq
  %v40 = vshrl.u32 %v39, 7
  %v41 = vsub.s32 0, %v40
  %v42 = vrot.slane %v37, %v41
  %v43 = vlaneseq
  %v44 = vshrl.u32 %v43, 7
  %v45 = vsub.s32 1, %v44
  %v46 = vrot.slane %v37, %v45
  %vm49 = vcmask 261120
  %v51 = vsel %vm49, %v21, 0
  %v54 = vsel %vm49, %v22, 0
  %v57 = vsel %vm49, %v23, 0
  %v60 = vsel %vm49, %v24, 0
  %v63 = vsel %vm49, %v25, 0
  %v66 = vsel %vm49, %v26, 0
  %v69 = vsel %vm49, %v27, 0
  %v72 = vsel %vm49, %v28, 0
  %74 = vmatprep.subr.mxu0 0.0
  %75 = vmatpush1.msra.mxu0 0.0
  %76 = vmatprep.subr.mxu0 0.0
  %77 = vmatpush1.msra.mxu0 0.0
  %78 = vmatprep.subr.mxu0 0.0
  %79 = vmatpush1.msra.mxu0 0.0
  %80 = vmatprep.subr.mxu0 0.0
  %81 = vmatpush1.msra.mxu0 0.0
  %82 = vmatprep.subr.mxu0 0.0
  %83 = vmatpush1.msra.mxu0 0.0
  %84 = vmatprep.subr.mxu0 0.0
  %85 = vmatpush1.msra.mxu0 0.0
  %86 = vmatprep.subr.mxu0 0.0
  %87 = vmatpush1.msra.mxu0 0.0
  %88 = vmatprep.subr.mxu0 0.0
  %89 = vmatpush1.msra.mxu0 0.0
  %90 = vmatprep.subr.mxu0 0.0
  %91 = vmatpush1.msra.mxu0 0.0
  %92 = vmatprep.subr.mxu0 0.0
  %93 = vmatpush1.msra.mxu0 0.0
  %94 = vmatprep.subr.mxu0 0.0
  %95 = vmatpush1.msra.mxu0 0.0
  %96 = vmatprep.subr.mxu0 0.0
  %97 = vmatpush1.msra.mxu0 0.0
  %98 = vmatprep.subr.mxu0 %v36
  %99 = vmatpush1.msra.mxu0 %v35
  %100 = vmatprep.subr.mxu0 %v34
  %101 = vmatpush1.msra.mxu0 %v33
  %102 = vmatprep.subr.mxu0 %v32
  %103 = vmatpush1.msra.mxu0 %v31
  %104 = vmatprep.subr.mxu0 %v30
  %105 = vmatpush1.msra.mxu0 %v29
  %106 = vmatprep.subr.mxu0 0.0
  %107 = vmatpush2.msra.mxu0 0.0
  %108 = vmatprep.subr.mxu0 0.0
  %109 = vmatpush2.msra.mxu0 0.0
  %110 = vmatprep.subr.mxu0 0.0
  %111 = vmatpush2.msra.mxu0 0.0
  %112 = vmatprep.subr.mxu0 0.0
  %113 = vmatpush2.msra.mxu0 0.0
  %114 = vmatprep.subr.mxu0 0.0
  %115 = vmatpush2.msra.mxu0 0.0
  %116 = vmatprep.subr.mxu0 0.0
  %117 = vmatpush2.msra.mxu0 0.0
  %118 = vmatprep.subr.mxu0 0.0
  %119 = vmatpush2.msra.mxu0 0.0
  %120 = vmatprep.subr.mxu0 0.0
  %121 = vmatpush2.msra.mxu0 0.0
  %122 = vmatprep.subr.mxu0 0.0
  %123 = vmatpush2.msra.mxu0 0.0
  %124 = vmatprep.subr.mxu0 0.0
  %125 = vmatpush2.msra.mxu0 0.0
  %126 = vmatprep.subr.mxu0 0.0
  %127 = vmatpush2.msra.mxu0 0.0
  %128 = vmatprep.subr.mxu0 0.0
  %129 = vmatpush2.msra.mxu0 0.0
  %130 = vmatprep.subr.mxu0 0.0
  %131 = vmatpush2.msra.mxu0 0.0
  %132 = vmatprep.subr.mxu0 0.0
  %133 = vmatpush2.msra.mxu0 0.0
  %134 = vmatprep.subr.mxu0 0.0
  %135 = vmatpush2.msra.mxu0 0.0
  %136 = vmatprep.subr.mxu0 0.0
  %137 = vmatpush2.msra.mxu0 0.0
  %138 = vmatprep.mubr.f32.mxu0 0.0
  %139 = vmatmul.mubr.f32.gmra.mxu0 %v51
  %v140 = vpop.f32.mrf.mxu0
  %v141 = vadd.f32 %v42, %v140
  %v142 = vpop.f32.mrf.mxu0
  %v143 = vadd.f32 %v46, %v142
  %144 = vmatprep.mubr.f32.mxu0 0.0
  %145 = vmatmul.mubr.f32.gmra.mxu0 %v54
  %v146 = vpop.f32.mrf.mxu0
  %v147 = vadd.f32 %v42, %v146
  %v148 = vpop.f32.mrf.mxu0
  %v149 = vadd.f32 %v46, %v148
  %150 = vmatprep.mubr.f32.mxu0 0.0
  %151 = vmatmul.mubr.f32.gmra.mxu0 %v57
  %v152 = vpop.f32.mrf.mxu0
  %v153 = vadd.f32 %v42, %v152
  %v154 = vpop.f32.mrf.mxu0
  %v155 = vadd.f32 %v46, %v154
  %156 = vmatprep.mubr.f32.mxu0 0.0
  %157 = vmatmul.mubr.f32.gmra.mxu0 %v60
  %v158 = vpop.f32.mrf.mxu0
  %v159 = vadd.f32 %v42, %v158
  %v160 = vpop.f32.mrf.mxu0
  %v161 = vadd.f32 %v46, %v160
  %162 = vmatprep.mubr.f32.mxu0 0.0
  %163 = vmatmul.mubr.f32.gmra.mxu0 %v63
  %v164 = vpop.f32.mrf.mxu0
  %v165 = vadd.f32 %v42, %v164
  %v166 = vpop.f32.mrf.mxu0
  %v167 = vadd.f32 %v46, %v166
  %168 = vmatprep.mubr.f32.mxu0 0.0
  %169 = vmatmul.mubr.f32.gmra.mxu0 %v66
  %v170 = vpop.f32.mrf.mxu0
  %v171 = vadd.f32 %v42, %v170
  %v172 = vpop.f32.mrf.mxu0
  %v173 = vadd.f32 %v46, %v172
  %174 = vmatprep.mubr.f32.mxu0 0.0
  %175 = vmatmul.mubr.f32.gmra.mxu0 %v69
  %v176 = vpop.f32.mrf.mxu0
  %v177 = vadd.f32 %v42, %v176
  %v178 = vpop.f32.mrf.mxu0
  %v179 = vadd.f32 %v46, %v178
  %180 = vmatprep.mubr.f32.mxu0 0.0
  %181 = vmatmul.mubr.f32.gmra.mxu0 %v72
  %v182 = vpop.f32.mrf.mxu0
  %v183 = vadd.f32 %v42, %v182
  %v184 = vpop.f32.mrf.mxu0
  %v185 = vadd.f32 %v46, %v184
  %186 = vdwg.mxu0
  %v187 = vmax.f32 %v141, 0.0
  %v188 = vmax.f32 %v143, 0.0
  %v189 = vmax.f32 %v147, 0.0
  %v190 = vmax.f32 %v149, 0.0
  %v191 = vmax.f32 %v153, 0.0
  %v192 = vmax.f32 %v155, 0.0
  %v193 = vmax.f32 %v159, 0.0
  %v194 = vmax.f32 %v161, 0.0
  %v195 = vmax.f32 %v165, 0.0
  %v196 = vmax.f32 %v167, 0.0
  %v197 = vmax.f32 %v171, 0.0
  %v198 = vmax.f32 %v173, 0.0
  %v199 = vmax.f32 %v177, 0.0
  %v200 = vmax.f32 %v179, 0.0
  %v201 = vmax.f32 %v183, 0.0
  %v202 = vmax.f32 %v185, 0.0
  %v203 = vld [vmem:[%s3] sm:$0x3]
  %v205 = vlaneseq
  %v206 = vshrl.u32 %v205, 7
  %v207 = vsub.s32 0, %v206
  %v208 = vrot.slane %v203, %v207
  %v209 = vlaneseq
  %v210 = vshrl.u32 %v209, 7
  %v211 = vsub.s32 1, %v210
  %v212 = vrot.slane %v203, %v211
  %v215 = vmul.f32 %v187, %v208
  %v216 = vmul.f32 %v188, %v212
  %v217 = vmul.f32 %v189, %v208
  %v218 = vmul.f32 %v190, %v212
  %v219 = vmul.f32 %v191, %v208
  %v220 = vmul.f32 %v192, %v212
  %v221 = vmul.f32 %v193, %v208
  %v222 = vmul.f32 %v194, %v212
  %v223 = vmul.f32 %v195, %v208
  %v224 = vmul.f32 %v196, %v212
  %v225 = vmul.f32 %v197, %v208
  %v226 = vmul.f32 %v198, %v212
  %v227 = vmul.f32 %v199, %v208
  %v228 = vmul.f32 %v200, %v212
  %v229 = vmul.f32 %v201, %v208
  %v230 = vmul.f32 %v202, %v212
  %v231 = vadd.f32 %v215, %v216
  %232 = vadd.xlane.f32.xlu0 %v231
  %v233 = vpop.xlane.xlu0 %232
  %v234 = vadd.f32 %v217, %v218
  %235 = vadd.xlane.f32.xlu0 %v234
  %v236 = vpop.xlane.xlu0 %235
  %v237 = vadd.f32 %v219, %v220
  %238 = vadd.xlane.f32.xlu0 %v237
  %v239 = vpop.xlane.xlu0 %238
  %v240 = vadd.f32 %v221, %v222
  %241 = vadd.xlane.f32.xlu0 %v240
  %v242 = vpop.xlane.xlu0 %241
  %v243 = vadd.f32 %v223, %v224
  %244 = vadd.xlane.f32.xlu0 %v243
  %v245 = vpop.xlane.xlu0 %244
  %v246 = vadd.f32 %v225, %v226
  %247 = vadd.xlane.f32.xlu0 %v246
  %v248 = vpop.xlane.xlu0 %247
  %v249 = vadd.f32 %v227, %v228
  %250 = vadd.xlane.f32.xlu0 %v249
  %v251 = vpop.xlane.xlu0 %250
  %v252 = vadd.f32 %v229, %v230
  %253 = vadd.xlane.f32.xlu0 %v252
  %v254 = vpop.xlane.xlu0 %253
  %s255 = sld [smem:[#allocation2]]
  %v256 = vstv %s255
  %v257 = vadd.f32 %v233, %v256
  %v258 = vadd.f32 %v236, %v256
  %v259 = vadd.f32 %v239, %v256
  %v260 = vadd.f32 %v242, %v256
  %v261 = vadd.f32 %v245, %v256
  %v262 = vadd.f32 %v248, %v256
  %v263 = vadd.f32 %v251, %v256
  %v264 = vadd.f32 %v254, %v256
  %vm265 = vcmask 7168
  %266 = vst.msk [vmem:[%s5] sm:$0xff] %vm265, %v257
  %267 = vst.msk [vmem:[%s5 + $0x8] sm:$0xff] %vm265, %v258
  %268 = vst.msk [vmem:[%s5 + $0x10] sm:$0xff] %vm265, %v259
  %269 = vst.msk [vmem:[%s5 + $0x18] sm:$0xff] %vm265, %v260
  %270 = vst.msk [vmem:[%s5 + $0x20] sm:$0xff] %vm265, %v261
  %271 = vst.msk [vmem:[%s5 + $0x28] sm:$0xff] %vm265, %v262
  %272 = vst.msk [vmem:[%s5 + $0x30] sm:$0xff] %vm265, %v263
  %273 = vst.msk [vmem:[%s5 + $0x38] sm:$0xff] %vm265, %v264
  // Predicated region
  $region22: #{tpu_custom_call.1} parent=0 // pred_check
    _
  $region23: #{tpu_custom_call.1} parent=0 // pred_check_branch
    %275 = sbr.rel (0) target = $region25
  $region24: #{tpu_custom_call.1} parent=0 // pred_region
    _
  $region25: #{tpu_custom_call.1} parent=0 // pred_fallthru
    _
  // Predicated region
  $region26: #{tpu_custom_call.1} parent=0 // pred_check
    _
  $region27: #{tpu_custom_call.1} parent=0 // pred_check_branch
    %277 = sbr.rel (0) target = $region29
  $region28: #{tpu_custom_call.1} parent=0 // pred_region
    _
  $region29: #{tpu_custom_call.1} parent=0 // pred_fallthru
    _

</llo_original>
